<compile_context>
chip_gen: v5e
topology: v5e:2x2
jax: 0.10.0
libtpu: 0.0.40
codegen_flags: <defaults>
</compile_context>

<pallas_src>
import jax
import jax.numpy as jnp
from jax.experimental import pallas as pl
from jax.experimental.pallas import tpu as pltpu

HIDDEN = 256
LANE = 128
MAX_TB = 128  # keep (TB, 256) f32 hidden resident in vregs.


def _round_up(x, m):
    return ((x + m - 1) // m) * m


def actor_kernel(s_ref, w1_ref, b1_ref, w2_ref, b2_ref, out_ref):
    # fcn_1 + ReLU : (TB, S) @ (S, 256) on the MXU, bias-add/relu on the VPU.
    h = jnp.dot(s_ref[...], w1_ref[...], preferred_element_type=jnp.float32)
    h = jnp.maximum(h + b1_ref[...], 0.0)
    # fcn_2 + tanh : (TB, 256) @ (256, 128-padded) on the MXU; tanh on the EUP.
    a = jnp.dot(h, w2_ref[...], preferred_element_type=jnp.float32)
    out_ref[...] = jnp.tanh(a + b2_ref[...]).astype(out_ref.dtype)


def actor_forward(s, w1, b1, w2, b2, *, block_b=MAX_TB):
    """s: (B, state_dim); w1: (state_dim, 256); b1: (1, 256);
    w2: (256, action_dim); b2: (1, action_dim). Returns (B, action_dim)."""
    B, state_dim = s.shape
    hidden, action_dim = w2.shape

    # --- lane-dense output: pad the tiny action_dim up to a 128-lane multiple.
    n_pad = _round_up(max(action_dim, LANE), LANE)
    w2p = jnp.zeros((hidden, n_pad), w2.dtype).at[:, :action_dim].set(w2)
    b2p = jnp.zeros((1, n_pad), b2.dtype).at[:, :action_dim].set(b2)

    # --- batch tiling: TB multiple of 8 (sublane), capped so hidden fits vregs.
    tb = min(block_b, _round_up(B, 8))
    tb = _round_up(tb, 8)
    b_pad = _round_up(B, tb)
    if b_pad != B:
        s_in = jnp.zeros((b_pad, state_dim), s.dtype).at[:B].set(s)
    else:
        s_in = s
    grid = (b_pad // tb,)

    out = pl.pallas_call(
        actor_kernel,
        out_shape=jax.ShapeDtypeStruct((b_pad, n_pad), jnp.float32),
        grid=grid,
        in_specs=[
            # batch tile streams; weights/biases keep the same block index
            # across the grid -> stay resident in VMEM (no re-DMA per step).
            pl.BlockSpec((tb, state_dim), lambda i: (i, 0)),
            pl.BlockSpec((state_dim, hidden), lambda i: (0, 0)),
            pl.BlockSpec((1, hidden), lambda i: (0, 0)),
            pl.BlockSpec((hidden, n_pad), lambda i: (0, 0)),
            pl.BlockSpec((1, n_pad), lambda i: (0, 0)),
        ],
        out_specs=pl.BlockSpec((tb, n_pad), lambda i: (i, 0)),
        compiler_params=pltpu.CompilerParams(
            # independent batch tiles -> shard across both TCs on v7x.
            dimension_semantics=("parallel",),
        ),
    )(s_in, w1, b1, w2p, b2p)

    return out[:B, :action_dim]


def init_params(key, state_dim, action_dim, hidden=HIDDEN):
    """Deterministic synthetic init (mimics nn.Linear's uniform fan-in init)."""
    k1, k2, k3, k4 = jax.random.split(key, 4)
    bound1 = 1.0 / jnp.sqrt(state_dim)
    bound2 = 1.0 / jnp.sqrt(hidden)
    # Stored as (in, out): the transpose of PyTorch's (out, in) weight.
    w1 = jax.random.uniform(k1, (state_dim, hidden), jnp.float32, -bound1, bound1)
    b1 = jax.random.uniform(k2, (1, hidden), jnp.float32, -bound1, bound1)
    w2 = jax.random.uniform(k3, (hidden, action_dim), jnp.float32, -bound2, bound2)
    b2 = jax.random.uniform(k4, (1, action_dim), jnp.float32, -bound2, bound2)
    return w1, b1, w2, b2


def actor_ref(s, w1, b1, w2, b2):
    h = jnp.maximum(s @ w1 + b1, 0.0)
    return jnp.tanh(h @ w2 + b2)


if __name__ == "__main__":
    state_dim = 8      # small state vector (maze observation)
    action_dim = 2     # 2-D continuous action

    key = jax.random.PRNGKey(0)
    k_in, k_params = jax.random.split(key)
    w1, b1, w2, b2 = init_params(k_params, state_dim, action_dim)

    # Exercise both the tiny-batch (single padded tile) and the multi-tile
    # (batch padded up to a TB multiple, grid > 1) paths.
    for batch in (2, 300):
        s = jax.random.normal(
            jax.random.fold_in(k_in, batch), (batch, state_dim), dtype=jnp.float32
        )
        out = jax.block_until_ready(actor_forward(s, w1, b1, w2, b2))
        expected = actor_ref(s, w1, b1, w2, b2)
        assert out.shape == (batch, action_dim)
        assert jnp.allclose(out, expected, atol=1e-5, rtol=1e-5), "mismatch vs reference"

    print("KERNEL_OK")
</pallas_src>

<mosaic_0001>
module attributes {stable_mosaic.version = 11 : i64} {
  func.func @actor_kernel(%arg0: i32, %arg1: memref<8x8xf32, #tpu.memory_space<vmem>>, %arg2: memref<8x256xf32, #tpu.memory_space<vmem>>, %arg3: memref<1x256xf32, #tpu.memory_space<vmem>>, %arg4: memref<256x128xf32, #tpu.memory_space<vmem>>, %arg5: memref<1x128xf32, #tpu.memory_space<vmem>>, %arg6: memref<8x128xf32, #tpu.memory_space<vmem>>) attributes {dimension_semantics = [#tpu.dimension_semantics<parallel>], iteration_bounds = array<i64: 1>, scalar_prefetch = 0 : i64, scratch_operands = 0 : i64, tpu.core_type = #tpu.core_type<tc>, window_params = [{transform_indices = @transform_0, window_bounds = array<i64: 8, 8>}, {pipeline_mode = #tpu.pipeline_mode<synchronous>, transform_indices = @transform_1, window_bounds = array<i64: 8, 256>}, {pipeline_mode = #tpu.pipeline_mode<synchronous>, transform_indices = @transform_2, window_bounds = array<i64: 1, 256>}, {pipeline_mode = #tpu.pipeline_mode<synchronous>, transform_indices = @transform_3, window_bounds = array<i64: 256, 128>}, {pipeline_mode = #tpu.pipeline_mode<synchronous>, transform_indices = @transform_4, window_bounds = array<i64: 1, 128>}, {transform_indices = @transform_5, window_bounds = array<i64: 8, 128>}]} {
    %c0 = arith.constant 0 : index
    %c0_0 = arith.constant 0 : index
    %0 = vector.load %arg1[%c0, %c0_0] : memref<8x8xf32, #tpu.memory_space<vmem>>, vector<8x8xf32>
    %c0_1 = arith.constant 0 : index
    %c0_2 = arith.constant 0 : index
    %1 = vector.load %arg2[%c0_1, %c0_2] : memref<8x256xf32, #tpu.memory_space<vmem>>, vector<8x256xf32>
    %cst = arith.constant dense<0.000000e+00> : vector<8x256xf32>
    %2 = tpu.matmul %0, %1, %cst {dimension_numbers = #tpu.dot_dimension_numbers<[1], [0], [0], [1], [0, 0, 1, 1], [], []>} : vector<8x8xf32>, vector<8x256xf32>, vector<8x256xf32> -> vector<8x256xf32>
    %c0_3 = arith.constant 0 : index
    %c0_4 = arith.constant 0 : index
    %3 = vector.load %arg3[%c0_3, %c0_4] : memref<1x256xf32, #tpu.memory_space<vmem>>, vector<1x256xf32>
    %4 = vector.broadcast %3 : vector<1x256xf32> to vector<8x256xf32>
    %5 = arith.addf %2, %4 : vector<8x256xf32>
    %cst_5 = arith.constant 0.000000e+00 : f32
    %6 = vector.broadcast %cst_5 : f32 to vector<8x256xf32>
    %7 = arith.maximumf %5, %6 : vector<8x256xf32>
    %c0_6 = arith.constant 0 : index
    %c0_7 = arith.constant 0 : index
    %8 = vector.load %arg4[%c0_6, %c0_7] : memref<256x128xf32, #tpu.memory_space<vmem>>, vector<256x128xf32>
    %cst_8 = arith.constant dense<0.000000e+00> : vector<8x128xf32>
    %9 = tpu.matmul %7, %8, %cst_8 {dimension_numbers = #tpu.dot_dimension_numbers<[1], [0], [0], [1], [0, 0, 1, 1], [], []>} : vector<8x256xf32>, vector<256x128xf32>, vector<8x128xf32> -> vector<8x128xf32>
    %c0_9 = arith.constant 0 : index
    %c0_10 = arith.constant 0 : index
    %10 = vector.load %arg5[%c0_9, %c0_10] : memref<1x128xf32, #tpu.memory_space<vmem>>, vector<1x128xf32>
    %11 = vector.broadcast %10 : vector<1x128xf32> to vector<8x128xf32>
    %12 = arith.addf %9, %11 : vector<8x128xf32>
    %13 = math.tanh %12 : vector<8x128xf32>
    %c0_11 = arith.constant 0 : index
    %c0_12 = arith.constant 0 : index
    %14 = vector.load %arg6[%c0_11, %c0_12] : memref<8x128xf32, #tpu.memory_space<vmem>>, vector<8x128xf32>
    tpu.vector_store %arg6[%c0_11, %c0_12], %13 {strides = array<i32>} : memref<8x128xf32, #tpu.memory_space<vmem>>, vector<8x128xf32>,
    return
  }
  func.func @transform_0(%arg0: i32) -> (i32, i32) {
    %c0_i32 = arith.constant 0 : i32
    %c0_i32_0 = arith.constant 0 : i32
    return %arg0, %c0_i32 : i32, i32
  }
  func.func @transform_1(%arg0: i32) -> (i32, i32) {
    %c0_i32 = arith.constant 0 : i32
    %c0_i32_0 = arith.constant 0 : i32
    %c0_i32_1 = arith.constant 0 : i32
    return %c0_i32, %c0_i32_0 : i32, i32
  }
  func.func @transform_2(%arg0: i32) -> (i32, i32) {
    %c0_i32 = arith.constant 0 : i32
    %c0_i32_0 = arith.constant 0 : i32
    %c0_i32_1 = arith.constant 0 : i32
    return %c0_i32, %c0_i32_0 : i32, i32
  }
  func.func @transform_3(%arg0: i32) -> (i32, i32) {
    %c0_i32 = arith.constant 0 : i32
    %c0_i32_0 = arith.constant 0 : i32
    %c0_i32_1 = arith.constant 0 : i32
    return %c0_i32, %c0_i32_0 : i32, i32
  }
  func.func @transform_4(%arg0: i32) -> (i32, i32) {
    %c0_i32 = arith.constant 0 : i32
    %c0_i32_0 = arith.constant 0 : i32
    %c0_i32_1 = arith.constant 0 : i32
    return %c0_i32, %c0_i32_0 : i32, i32
  }
  func.func @transform_5(%arg0: i32) -> (i32, i32) {
    %c0_i32 = arith.constant 0 : i32
    %c0_i32_0 = arith.constant 0 : i32
    return %arg0, %c0_i32 : i32, i32
  }
}

</mosaic_0001>

<llo_original>
// kernel: tpu_custom_call.1
$region0: #{tpu_custom_call.1}
  #allocation0 [shape = 'u32[]', space=smem, size = 0x4, offset = 0x4, fixed_abs, tag = 'smem constant byte address 0x4 - core index']
  #allocation1 [shape = 'u32[72,128]{1,0:T(1,128)}', space=vmem, size = 0x9000, scoped, tag = 'internal scratch']
  %s0 = inlined_call_operand.hbm [shape: f32[8,8], index: 0, kind: input, shape index: {}]
  %s1 = inlined_call_operand.hbm [shape: f32[8,256], index: 1, kind: input, shape index: {}]
  %s2 = inlined_call_operand.hbm [shape: f32[1,256], index: 2, kind: input, shape index: {}]
  %s3 = inlined_call_operand.hbm [shape: f32[256,128], index: 3, kind: input, shape index: {}]
  %s4 = inlined_call_operand.vmem [shape: f32[1,128], index: 4, kind: input, shape index: {}]
  %s5 = inlined_call_operand.hbm [shape: f32[8,128], index: 5, kind: output, shape index: {}]
  %s6 = sld [smem:[#allocation0]]
  $region46: #{tpu_custom_call.1} parent=0
    _
  %s8 = ssub.s32 1, %s6
  %s9 = scalar_select 0, %s8, %s6
  $region1: #{tpu_custom_call.1} parent=0
    #allocation2 [shape = 'u8[4096]{0}', space=vmem, size = 0x1000, scoped, tag = 'input window, operand 0, single buffered']
    #allocation3 [shape = 's32[1]{0}', space=sflag, size = 0x4, scoped, tag = 'scoped memory for tpu_custom_call.1']
    #allocation4 [shape = 's32[1]{0}', space=sflag, size = 0x4, scoped, tag = 'scoped memory for tpu_custom_call.1']
    #allocation5 [shape = 'u8[8192]{0}', space=vmem, size = 0x2000, scoped, tag = 'input window, operand 1, single buffered']
    #allocation6 [shape = 's32[1]{0}', space=sflag, size = 0x4, scoped, tag = 'scoped memory for tpu_custom_call.1']
    #allocation7 [shape = 'u8[1024]{0}', space=vmem, size = 0x400, scoped, tag = 'input window, operand 2, single buffered']
    #allocation8 [shape = 'u8[131072]{0}', space=vmem, size = 0x20000, scoped, tag = 'input window, operand 3, single buffered']
    #allocation9 [shape = 's32[1]{0}', space=sflag, size = 0x4, scoped, tag = 'scoped memory for tpu_custom_call.1']
    #allocation10 [shape = 'u8[4096]{0}', space=vmem, size = 0x1000, scoped, tag = 'output window, operand 0, single buffered']
    %10 = vsyncpa [#allocation3], 0
    %11 = vsyncpa [#allocation6], 0
    %12 = vsyncpa [#allocation9], 0
    %13 = vsyncpa [#allocation4], 0
    // Predicated region
    $region2: #{tpu_custom_call.1} parent=1 // pred_check
      _
    $region3: #{tpu_custom_call.1} parent=1 // pred_check_branch
      %15 = sbr.rel (0) target = $region5
    $region4: #{tpu_custom_call.1} parent=1 // pred_region
      %17 = vsyncadd [#allocation3], 0
      %s19 = sshll.u32 %s0, 4
      %s20 = int_to_ptr.hbm [resolvable:$true] %s19
      %s21 = sshll.u32 [#allocation2], 4
      %s22 = int_to_ptr.vmem [resolvable:$true] %s21
      %24 = dma.hbm_to_vmem [thread:$0]  %s20, 128, %s22, [#allocation3]
    $region5: #{tpu_custom_call.1} parent=1 // pred_fallthru
      _
    // Predicated region
    $region6: #{tpu_custom_call.1} parent=1 // pred_check
      _
    $region7: #{tpu_custom_call.1} parent=1 // pred_check_branch
      %26 = sbr.rel (0) target = $region9
    $region8: #{tpu_custom_call.1} parent=1 // pred_region
      %28 = vsyncadd [#allocation6], 0
      %s30 = sshll.u32 %s1, 4
      %s31 = int_to_ptr.hbm [resolvable:$true] %s30
      %s32 = sshll.u32 [#allocation5], 4
      %s33 = int_to_ptr.vmem [resolvable:$true] %s32
      %35 = dma.hbm_to_vmem [thread:$0]  %s31, 256, %s33, [#allocation6]
    $region9: #{tpu_custom_call.1} parent=1 // pred_fallthru
      _
    // Predicated region
    $region10: #{tpu_custom_call.1} parent=1 // pred_check
      _
    $region11: #{tpu_custom_call.1} parent=1 // pred_check_branch
      %37 = sbr.rel (0) target = $region13
    $region12: #{tpu_custom_call.1} parent=1 // pred_region
      %39 = vsyncadd [#allocation6], 0
      %s41 = sshll.u32 %s2, 4
      %s42 = int_to_ptr.hbm [resolvable:$true] %s41
      %s43 = sshll.u32 [#allocation7], 4
      %s44 = int_to_ptr.vmem [resolvable:$true] %s43
      %46 = dma.hbm_to_vmem [thread:$0]  %s42, 32, %s44, [#allocation6]
    $region13: #{tpu_custom_call.1} parent=1 // pred_fallthru
      _
    // Predicated region
    $region14: #{tpu_custom_call.1} parent=1 // pred_check
      _
    $region15: #{tpu_custom_call.1} parent=1 // pred_check_branch
      %48 = sbr.rel (0) target = $region17
    $region16: #{tpu_custom_call.1} parent=1 // pred_region
      %50 = vsyncadd [#allocation9], 0
      %s51 = sshll.u32 %s3, 4
      %s52 = int_to_ptr.hbm [resolvable:$true] %s51
      %s53 = sshll.u32 [#allocation8], 4
      %s54 = int_to_ptr.vmem [resolvable:$true] %s53
      %59 = dma.hbm_to_vmem [thread:$0]  %s52, 4096, %s54, [#allocation9], 128, 128, 8
    $region17: #{tpu_custom_call.1} parent=1 // pred_fallthru
      _
    // Predicated region
    $region18: #{tpu_custom_call.1} parent=1 // pred_check
      _
    $region19: #{tpu_custom_call.1} parent=1 // pred_check_branch
      %61 = sbr.rel (0) target = $region21
    $region20: #{tpu_custom_call.1} parent=1 // pred_region
      _
    $region21: #{tpu_custom_call.1} parent=1 // pred_fallthru
      _
    // Predicated region
    $region22: #{tpu_custom_call.1} parent=1 // pred_check
      _
    $region23: #{tpu_custom_call.1} parent=1 // pred_check_branch
      %63 = sbr.rel (0) target = $region25
    $region24: #{tpu_custom_call.1} parent=1 // pred_region
      %65 = dma.done [#allocation3], 128
    $region25: #{tpu_custom_call.1} parent=1 // pred_fallthru
      _
    // Predicated region
    $region26: #{tpu_custom_call.1} parent=1 // pred_check
      _
    $region27: #{tpu_custom_call.1} parent=1 // pred_check_branch
      %67 = sbr.rel (0) target = $region29
    $region28: #{tpu_custom_call.1} parent=1 // pred_region
      %69 = dma.done [#allocation6], 256
    $region29: #{tpu_custom_call.1} parent=1 // pred_fallthru
      _
    // Predicated region
    $region30: #{tpu_custom_call.1} parent=1 // pred_check
      _
    $region31: #{tpu_custom_call.1} parent=1 // pred_check_branch
      %71 = sbr.rel (0) target = $region33
    $region32: #{tpu_custom_call.1} parent=1 // pred_region
      %73 = dma.done [#allocation6], 32
    $region33: #{tpu_custom_call.1} parent=1 // pred_fallthru
      _
    // Predicated region
    $region34: #{tpu_custom_call.1} parent=1 // pred_check
      _
    $region35: #{tpu_custom_call.1} parent=1 // pred_check_branch
      %75 = sbr.rel (0) target = $region37
    $region36: #{tpu_custom_call.1} parent=1 // pred_region
      %77 = dma.done [#allocation9], 4096
    $region37: #{tpu_custom_call.1} parent=1 // pred_fallthru
      _
    %v78 = vld [vmem:[#allocation2] sm:$0xff]
    %v79 = vld [vmem:[#allocation5] sm:$0xff]
    %v80 = vld [vmem:[#allocation5 + $0x8] sm:$0xff]
    %v81 = vld [vmem:[#allocation7] sm:$0x3]
    %v83 = vperm.slane %v81, 0
    %v84 = vperm.slane %v81, 1
    %vm87 = vcmask 64512
    %v89 = vsel %vm87, %v78, 0
    %91 = vmatpush.msra.mxu0 0.0
    %92 = vmatpush.msra.mxu0 0.0
    %93 = vmatpush.msra.mxu0 0.0
    %94 = vmatpush.msra.mxu0 0.0
    %95 = vmatpush.msra.mxu0 0.0
    %96 = vmatpush.msra.mxu0 0.0
    %97 = vmatpush.msra.mxu0 0.0
    %98 = vmatpush.msra.mxu0 0.0
    %99 = vmatpush.msra.mxu0 0.0
    %100 = vmatpush.msra.mxu0 0.0
    %101 = vmatpush.msra.mxu0 0.0
    %102 = vmatpush.msra.mxu0 0.0
    %103 = vmatpush.msra.mxu0 0.0
    %104 = vmatpush.msra.mxu0 0.0
    %105 = vmatpush.msra.mxu0 0.0
    %106 = vmatpush.msra.mxu0 %v79
    %107 = vmatmul.f32.gmra.mxu0 %v89
    %v108 = vpop.f32.mrf.mxu0
    %v109 = vadd.f32 %v83, %v108
    %110 = vdwg.mxu0
    %111 = vmatpush.msra.mxu0 0.0
    %112 = vmatpush.msra.mxu0 0.0
    %113 = vmatpush.msra.mxu0 0.0
    %114 = vmatpush.msra.mxu0 0.0
    %115 = vmatpush.msra.mxu0 0.0
    %116 = vmatpush.msra.mxu0 0.0
    %117 = vmatpush.msra.mxu0 0.0
    %118 = vmatpush.msra.mxu0 0.0
    %119 = vmatpush.msra.mxu0 0.0
    %120 = vmatpush.msra.mxu0 0.0
    %121 = vmatpush.msra.mxu0 0.0
    %122 = vmatpush.msra.mxu0 0.0
    %123 = vmatpush.msra.mxu0 0.0
    %124 = vmatpush.msra.mxu0 0.0
    %125 = vmatpush.msra.mxu0 0.0
    %126 = vmatpush.msra.mxu0 %v80
    %127 = vmatmul.f32.gmra.mxu0 %v89
    %v128 = vpop.f32.mrf.mxu0
    %v129 = vadd.f32 %v84, %v128
    %130 = vdwg.mxu0
    %v131 = vmax.f32 %v109, 0.0
    %v132 = vmax.f32 %v129, 0.0
    %v133 = vld [vmem:[#allocation8] sm:$0xff]
    %v134 = vld [vmem:[#allocation8 + $0x8] sm:$0xff]
    %v135 = vld [vmem:[#allocation8 + $0x10] sm:$0xff]
    %v136 = vld [vmem:[#allocation8 + $0x18] sm:$0xff]
    %v137 = vld [vmem:[#allocation8 + $0x20] sm:$0xff]
    %v138 = vld [vmem:[#allocation8 + $0x28] sm:$0xff]
    %v139 = vld [vmem:[#allocation8 + $0x30] sm:$0xff]
    %v140 = vld [vmem:[#allocation8 + $0x38] sm:$0xff]
    %v141 = vld [vmem:[#allocation8 + $0x40] sm:$0xff]
    %v142 = vld [vmem:[#allocation8 + $0x48] sm:$0xff]
    %v143 = vld [vmem:[#allocation8 + $0x50] sm:$0xff]
    %v144 = vld [vmem:[#allocation8 + $0x58] sm:$0xff]
    %v145 = vld [vmem:[#allocation8 + $0x60] sm:$0xff]
    %v146 = vld [vmem:[#allocation8 + $0x68] sm:$0xff]
    %v147 = vld [vmem:[#allocation8 + $0x70] sm:$0xff]
    %v148 = vld [vmem:[#allocation8 + $0x78] sm:$0xff]
    %v149 = vld [vmem:[#allocation8 + $0x80] sm:$0xff]
    %v150 = vld [vmem:[#allocation8 + $0x88] sm:$0xff]
    %v151 = vld [vmem:[#allocation8 + $0x90] sm:$0xff]
    %v152 = vld [vmem:[#allocation8 + $0x98] sm:$0xff]
    %v153 = vld [vmem:[#allocation8 + $0xa0] sm:$0xff]
    %v154 = vld [vmem:[#allocation8 + $0xa8] sm:$0xff]
    %v155 = vld [vmem:[#allocation8 + $0xb0] sm:$0xff]
    %v156 = vld [vmem:[#allocation8 + $0xb8] sm:$0xff]
    %v157 = vld [vmem:[#allocation8 + $0xc0] sm:$0xff]
    %v158 = vld [vmem:[#allocation8 + $0xc8] sm:$0xff]
    %v159 = vld [vmem:[#allocation8 + $0xd0] sm:$0xff]
    %v160 = vld [vmem:[#allocation8 + $0xd8] sm:$0xff]
    %v161 = vld [vmem:[#allocation8 + $0xe0] sm:$0xff]
    %v162 = vld [vmem:[#allocation8 + $0xe8] sm:$0xff]
    %v163 = vld [vmem:[#allocation8 + $0xf0] sm:$0xff]
    %v164 = vld [vmem:[#allocation8 + $0xf8] sm:$0xff]
    %v165 = vld [vmem:[%s4] sm:$0x1]
    %v167 = vperm.slane %v165, 0
    %169 = vmatpush.msra.mxu0 %v148
    %170 = vmatpush.msra.mxu0 %v147
    %171 = vmatpush.msra.mxu0 %v146
    %172 = vmatpush.msra.mxu0 %v145
    %173 = vmatpush.msra.mxu0 %v144
    %174 = vmatpush.msra.mxu0 %v143
    %175 = vmatpush.msra.mxu0 %v142
    %176 = vmatpush.msra.mxu0 %v141
    %177 = vmatpush.msra.mxu0 %v140
    %178 = vmatpush.msra.mxu0 %v139
    %179 = vmatpush.msra.mxu0 %v138
    %180 = vmatpush.msra.mxu0 %v137
    %181 = vmatpush.msra.mxu0 %v136
    %182 = vmatpush.msra.mxu0 %v135
    %183 = vmatpush.msra.mxu0 %v134
    %184 = vmatpush.msra.mxu0 %v133
    %185 = vmatmul.f32.gmra.mxu0 %v131
    %v186 = vpop.f32.mrf.mxu0
    %v187 = vadd.f32 %v167, %v186
    %188 = vdwg.mxu0
    %189 = vmatpush.msra.mxu0 %v164
    %190 = vmatpush.msra.mxu0 %v163
    %191 = vmatpush.msra.mxu0 %v162
    %192 = vmatpush.msra.mxu0 %v161
    %193 = vmatpush.msra.mxu0 %v160
    %194 = vmatpush.msra.mxu0 %v159
    %195 = vmatpush.msra.mxu0 %v158
    %196 = vmatpush.msra.mxu0 %v157
    %197 = vmatpush.msra.mxu0 %v156
    %198 = vmatpush.msra.mxu0 %v155
    %199 = vmatpush.msra.mxu0 %v154
    %200 = vmatpush.msra.mxu0 %v153
    %201 = vmatpush.msra.mxu0 %v152
    %202 = vmatpush.msra.mxu0 %v151
    %203 = vmatpush.msra.mxu0 %v150
    %204 = vmatpush.msra.mxu0 %v149
    %205 = vmatmul.f32.gmra.mxu0 %v132
    %v206 = vpop.f32.mrf.mxu0
    %v207 = vadd.f32 %v187, %v206
    %208 = vdwg.mxu0
    %v209 = vtanh.pop %v207
    %210 = vst [vmem:[#allocation10] sm:$0xff] %v209
    // Predicated region
    $region38: #{tpu_custom_call.1} parent=1 // pred_check
      _
    $region39: #{tpu_custom_call.1} parent=1 // pred_check_branch
      %212 = sbr.rel (0) target = $region41
    $region40: #{tpu_custom_call.1} parent=1 // pred_region
      %214 = vsyncadd [#allocation4], 0
      %s216 = sshll.u32 [#allocation10], 4
      %s217 = int_to_ptr.vmem [resolvable:$true] %s216
      %s218 = sshll.u32 %s5, 4
      %s219 = int_to_ptr.hbm [resolvable:$true] %s218
      %221 = dma.vmem_to_hbm [thread:$0]  %s217, 128, %s219, [#allocation4]
    $region41: #{tpu_custom_call.1} parent=1 // pred_fallthru
      _
    // Predicated region
    $region42: #{tpu_custom_call.1} parent=1 // pred_check
      _
    $region43: #{tpu_custom_call.1} parent=1 // pred_check_branch
      %223 = sbr.rel (0) target = $region45
    $region44: #{tpu_custom_call.1} parent=1 // pred_region
      %225 = dma.done [#allocation4], 128
    $region45: #{tpu_custom_call.1} parent=1 // pred_fallthru
      _
    %226 = vsyncpa [#allocation3], 1
    %227 = vsyncpa [#allocation6], 1
    %228 = vsyncpa [#allocation9], 1
    %229 = vsyncpa [#allocation4], 1

</llo_original>
